<compile_context>
chip_gen: v7x
topology: tpu7x:2x2x1
jax: 0.10.0
libtpu: 0.0.40
codegen_flags: <defaults>
</compile_context>

<pallas_src>
import functools

import jax
import jax.numpy as jnp
from jax import lax
from jax.experimental import pallas as pl
from jax.experimental.pallas import tpu as pltpu

_EPS = 1e-7  # matches torch.cosine_similarity eps=1e-07


def _mnrl_kernel(a_ref, p_ref, n_ref, loss_ref, *, num_negatives, embed_dim):
    """Per-row MNRL loss for one batch tile.

    a_ref:    (TB, D)      anchor tile
    p_ref:    (TB, D)      positive tile
    n_ref:    (TB, K*D)    negatives tile (row b holds its K negatives packed)
    loss_ref: (TB, 1)      per-row cross-entropy loss with label 0
    """
    # f32 math throughout (no-op casts for f32 inputs; upcast for bf16).
    a = a_ref[...].astype(jnp.float32)                    # (TB, D)
    p = p_ref[...].astype(jnp.float32)                    # (TB, D)

    eps_sq = jnp.float32(_EPS * _EPS)
    a_sq = jnp.sum(a * a, axis=-1, keepdims=True)         # (TB, 1)
    p_sq = jnp.sum(p * p, axis=-1, keepdims=True)         # (TB, 1)
    pos_dot = jnp.sum(a * p, axis=-1, keepdims=True)      # (TB, 1)
    pos_sim = pos_dot * lax.rsqrt(jnp.maximum(a_sq * p_sq, eps_sq))

    # Unrolled loop over the K negatives (K is a small Python constant).
    m = pos_sim
    neg_sims = []
    for j in range(num_negatives):
        n_j = n_ref[:, j * embed_dim:(j + 1) * embed_dim].astype(jnp.float32)
        n_sq = jnp.sum(n_j * n_j, axis=-1, keepdims=True)          # (TB, 1)
        n_dot = jnp.sum(a * n_j, axis=-1, keepdims=True)           # (TB, 1)
        sim_j = n_dot * lax.rsqrt(jnp.maximum(a_sq * n_sq, eps_sq))
        neg_sims.append(sim_j)
        m = jnp.maximum(m, sim_j)

    # CrossEntropy with label 0 over scores = [pos_sim, neg_sims...]:
    #   loss_row = logsumexp(scores) - pos_sim
    sumexp = jnp.exp(pos_sim - m)
    for sim_j in neg_sims:
        sumexp = sumexp + jnp.exp(sim_j - m)
    loss_ref[...] = (m + jnp.log(sumexp)) - pos_sim


def _choose_row_tile(batch, embed_dim, k, itemsize,
                     vmem_budget_bytes=12 * 1024 * 1024):
    """Largest multiple-of-8 row tile whose double-buffered input blocks fit a
    conservative VMEM budget (safe for v5e/v6e/v7x default scoped limits)."""
    bytes_per_row = (2 + k) * embed_dim * itemsize + 4
    tb = vmem_budget_bytes // (2 * bytes_per_row)          # x2: double buffering
    tb = int(max(8, min(1024, (tb // 8) * 8)))
    if batch <= tb:
        return batch                                       # full-extent block
    return tb


def multiple_negative_ranking_loss(anchor, positive_embeds, negative_embeds,
                                   margin=1.0, verbose=False, row_tile=None):
    """Forward pass of MultipleNegativeRankingLoss (margin unused, as in the
    reference module's forward)."""
    B, D = anchor.shape
    if negative_embeds.shape[0] % B != 0:
        raise ValueError(
            f"negative_embeds rows ({negative_embeds.shape[0]}) must be a "
            f"multiple of the batch size ({B}).")
    K = negative_embeds.shape[0] // B
    # Zero-copy pack: row b holds its K negatives contiguously (== torch
    # view(-1, K, D) grouping, flattened along the feature axis).
    neg_packed = negative_embeds.reshape(B, K * D)

    tb = row_tile if row_tile is not None else _choose_row_tile(
        B, D, K, jnp.dtype(anchor.dtype).itemsize)
    grid = (pl.cdiv(B, tb),)

    kernel = functools.partial(_mnrl_kernel, num_negatives=K, embed_dim=D)
    per_row_loss = pl.pallas_call(
        kernel,
        out_shape=jax.ShapeDtypeStruct((B, 1), jnp.float32),
        grid=grid,
        in_specs=[
            pl.BlockSpec((tb, D), lambda i: (i, 0)),
            pl.BlockSpec((tb, D), lambda i: (i, 0)),
            pl.BlockSpec((tb, K * D), lambda i: (i, 0)),
        ],
        out_specs=pl.BlockSpec((tb, 1), lambda i: (i, 0)),
        compiler_params=pltpu.CompilerParams(
            dimension_semantics=("parallel",),
            vmem_limit_bytes=32 * 1024 * 1024,
        ),
    )(anchor, positive_embeds, neg_packed)

    if verbose:
        # Mirrors the torch forward's `print(scores)`; computed off the hot
        # path in plain JAX (under jit this prints a tracer).
        neg = negative_embeds.reshape(B, K, D)

        def _cos(x, y):
            num = jnp.sum(x * y, axis=-1)
            den = jnp.maximum(
                jnp.linalg.norm(x, axis=-1) * jnp.linalg.norm(y, axis=-1), _EPS)
            return num / den

        scores = jnp.concatenate(
            [_cos(anchor, positive_embeds)[:, None],
             _cos(anchor[:, None, :], neg)], axis=-1)
        print(scores)

    # Final mean over per-row losses: tiny B-element reduce outside the kernel
    # so the batch grid axis stays fully parallel (and correct under tiling).
    return jnp.mean(per_row_loss)


def _reference(anchor, positive_embeds, negative_embeds):
    """Plain-JAX reference of the torch forward, for correctness checking."""
    B, D = anchor.shape
    k = negative_embeds.shape[0] // B
    neg = negative_embeds.reshape(B, k, D)

    def cos(x, y):
        num = jnp.sum(x * y, axis=-1)
        den = jnp.maximum(
            jnp.linalg.norm(x, axis=-1) * jnp.linalg.norm(y, axis=-1), _EPS)
        return num / den

    pos_sim = cos(anchor, positive_embeds)                    # (B,)
    neg_sim = cos(anchor[:, None, :], neg)                    # (B, K)
    scores = jnp.concatenate([pos_sim[:, None], neg_sim], axis=-1)
    lse = jax.scipy.special.logsumexp(scores, axis=-1)
    return jnp.mean(lse - scores[:, 0])


if __name__ == "__main__":
    B, D, K = 32, 128, 3
    key = jax.random.PRNGKey(0)
    ka, kp, kn = jax.random.split(key, 3)
    anchor = jax.random.normal(ka, (B, D), dtype=jnp.float32)
    positive = jax.random.normal(kp, (B, D), dtype=jnp.float32)
    negative = jax.random.normal(kn, (B * K, D), dtype=jnp.float32)

    # row_tile=8 -> grid=(4,): exercises the tiled, auto-pipelined path.
    loss = multiple_negative_ranking_loss(anchor, positive, negative, row_tile=8)
    loss = jax.block_until_ready(loss)

    ref = _reference(anchor, positive, negative)
    assert jnp.allclose(loss, ref, atol=1e-5, rtol=1e-5), (loss, ref)

    print("KERNEL_OK")
</pallas_src>

<mosaic_0001>
module attributes {stable_mosaic.version = 11 : i64} {
  func.func @_mnrl_kernel(%arg0: i32, %arg1: memref<8x128xf32, #tpu.memory_space<vmem>>, %arg2: memref<8x128xf32, #tpu.memory_space<vmem>>, %arg3: memref<8x384xf32, #tpu.memory_space<vmem>>, %arg4: memref<8x1xf32, #tpu.memory_space<vmem>>) attributes {dimension_semantics = [#tpu.dimension_semantics<parallel>], iteration_bounds = array<i64: 4>, scalar_prefetch = 0 : i64, scratch_operands = 0 : i64, tpu.core_type = #tpu.core_type<tc>, window_params = [{transform_indices = @transform_0, window_bounds = array<i64: 8, 128>}, {transform_indices = @transform_1, window_bounds = array<i64: 8, 128>}, {transform_indices = @transform_2, window_bounds = array<i64: 8, 384>}, {transform_indices = @transform_3, window_bounds = array<i64: 8, 1>}]} {
    %c0 = arith.constant 0 : index
    %c0_0 = arith.constant 0 : index
    %0 = vector.load %arg1[%c0, %c0_0] : memref<8x128xf32, #tpu.memory_space<vmem>>, vector<8x128xf32>
    %c0_1 = arith.constant 0 : index
    %c0_2 = arith.constant 0 : index
    %1 = vector.load %arg2[%c0_1, %c0_2] : memref<8x128xf32, #tpu.memory_space<vmem>>, vector<8x128xf32>
    %2 = arith.mulf %0, %0 : vector<8x128xf32>
    %cst = arith.constant dense<0.000000e+00> : vector<8xf32>
    %3 = vector.multi_reduction <add>, %2, %cst [1] : vector<8x128xf32> to vector<8xf32>
    %4 = vector.shape_cast %3 : vector<8xf32> to vector<8x1xf32>
    %5 = arith.mulf %1, %1 : vector<8x128xf32>
    %cst_3 = arith.constant dense<0.000000e+00> : vector<8xf32>
    %6 = vector.multi_reduction <add>, %5, %cst_3 [1] : vector<8x128xf32> to vector<8xf32>
    %7 = vector.shape_cast %6 : vector<8xf32> to vector<8x1xf32>
    %8 = arith.mulf %0, %1 : vector<8x128xf32>
    %cst_4 = arith.constant dense<0.000000e+00> : vector<8xf32>
    %9 = vector.multi_reduction <add>, %8, %cst_4 [1] : vector<8x128xf32> to vector<8xf32>
    %10 = vector.shape_cast %9 : vector<8xf32> to vector<8x1xf32>
    %11 = arith.mulf %4, %7 : vector<8x1xf32>
    %cst_5 = arith.constant 9.99999982E-15 : f32
    %12 = vector.broadcast %cst_5 : f32 to vector<8x1xf32>
    %13 = arith.maximumf %11, %12 : vector<8x1xf32>
    %14 = math.rsqrt %13 : vector<8x1xf32>
    %15 = arith.mulf %10, %14 : vector<8x1xf32>
    %c0_6 = arith.constant 0 : index
    %c0_7 = arith.constant 0 : index
    %16 = vector.load %arg3[%c0_6, %c0_7] : memref<8x384xf32, #tpu.memory_space<vmem>>, vector<8x128xf32>
    %17 = arith.mulf %16, %16 : vector<8x128xf32>
    %cst_8 = arith.constant dense<0.000000e+00> : vector<8xf32>
    %18 = vector.multi_reduction <add>, %17, %cst_8 [1] : vector<8x128xf32> to vector<8xf32>
    %19 = vector.shape_cast %18 : vector<8xf32> to vector<8x1xf32>
    %20 = arith.mulf %0, %16 : vector<8x128xf32>
    %cst_9 = arith.constant dense<0.000000e+00> : vector<8xf32>
    %21 = vector.multi_reduction <add>, %20, %cst_9 [1] : vector<8x128xf32> to vector<8xf32>
    %22 = vector.shape_cast %21 : vector<8xf32> to vector<8x1xf32>
    %23 = arith.mulf %4, %19 : vector<8x1xf32>
    %cst_10 = arith.constant 9.99999982E-15 : f32
    %24 = vector.broadcast %cst_10 : f32 to vector<8x1xf32>
    %25 = arith.maximumf %23, %24 : vector<8x1xf32>
    %26 = math.rsqrt %25 : vector<8x1xf32>
    %27 = arith.mulf %22, %26 : vector<8x1xf32>
    %28 = arith.maximumf %15, %27 : vector<8x1xf32>
    %c0_11 = arith.constant 0 : index
    %c128 = arith.constant 128 : index
    %29 = vector.load %arg3[%c0_11, %c128] : memref<8x384xf32, #tpu.memory_space<vmem>>, vector<8x128xf32>
    %30 = arith.mulf %29, %29 : vector<8x128xf32>
    %cst_12 = arith.constant dense<0.000000e+00> : vector<8xf32>
    %31 = vector.multi_reduction <add>, %30, %cst_12 [1] : vector<8x128xf32> to vector<8xf32>
    %32 = vector.shape_cast %31 : vector<8xf32> to vector<8x1xf32>
    %33 = arith.mulf %0, %29 : vector<8x128xf32>
    %cst_13 = arith.constant dense<0.000000e+00> : vector<8xf32>
    %34 = vector.multi_reduction <add>, %33, %cst_13 [1] : vector<8x128xf32> to vector<8xf32>
    %35 = vector.shape_cast %34 : vector<8xf32> to vector<8x1xf32>
    %36 = arith.mulf %4, %32 : vector<8x1xf32>
    %cst_14 = arith.constant 9.99999982E-15 : f32
    %37 = vector.broadcast %cst_14 : f32 to vector<8x1xf32>
    %38 = arith.maximumf %36, %37 : vector<8x1xf32>
    %39 = math.rsqrt %38 : vector<8x1xf32>
    %40 = arith.mulf %35, %39 : vector<8x1xf32>
    %41 = arith.maximumf %28, %40 : vector<8x1xf32>
    %c0_15 = arith.constant 0 : index
    %c256 = arith.constant 256 : index
    %42 = vector.load %arg3[%c0_15, %c256] : memref<8x384xf32, #tpu.memory_space<vmem>>, vector<8x128xf32>
    %43 = arith.mulf %42, %42 : vector<8x128xf32>
    %cst_16 = arith.constant dense<0.000000e+00> : vector<8xf32>
    %44 = vector.multi_reduction <add>, %43, %cst_16 [1] : vector<8x128xf32> to vector<8xf32>
    %45 = vector.shape_cast %44 : vector<8xf32> to vector<8x1xf32>
    %46 = arith.mulf %0, %42 : vector<8x128xf32>
    %cst_17 = arith.constant dense<0.000000e+00> : vector<8xf32>
    %47 = vector.multi_reduction <add>, %46, %cst_17 [1] : vector<8x128xf32> to vector<8xf32>
    %48 = vector.shape_cast %47 : vector<8xf32> to vector<8x1xf32>
    %49 = arith.mulf %4, %45 : vector<8x1xf32>
    %cst_18 = arith.constant 9.99999982E-15 : f32
    %50 = vector.broadcast %cst_18 : f32 to vector<8x1xf32>
    %51 = arith.maximumf %49, %50 : vector<8x1xf32>
    %52 = math.rsqrt %51 : vector<8x1xf32>
    %53 = arith.mulf %48, %52 : vector<8x1xf32>
    %54 = arith.maximumf %41, %53 : vector<8x1xf32>
    %55 = arith.subf %15, %54 : vector<8x1xf32>
    %56 = math.exp %55 : vector<8x1xf32>
    %57 = arith.subf %27, %54 : vector<8x1xf32>
    %58 = math.exp %57 : vector<8x1xf32>
    %59 = arith.addf %56, %58 : vector<8x1xf32>
    %60 = arith.subf %40, %54 : vector<8x1xf32>
    %61 = math.exp %60 : vector<8x1xf32>
    %62 = arith.addf %59, %61 : vector<8x1xf32>
    %63 = arith.subf %53, %54 : vector<8x1xf32>
    %64 = math.exp %63 : vector<8x1xf32>
    %65 = arith.addf %62, %64 : vector<8x1xf32>
    %66 = math.log %65 : vector<8x1xf32>
    %67 = arith.addf %54, %66 : vector<8x1xf32>
    %68 = arith.subf %67, %15 : vector<8x1xf32>
    %c0_19 = arith.constant 0 : index
    %c0_20 = arith.constant 0 : index
    %69 = vector.load %arg4[%c0_19, %c0_20] : memref<8x1xf32, #tpu.memory_space<vmem>>, vector<8x1xf32>
    tpu.vector_store %arg4[%c0_19, %c0_20], %68 {strides = array<i32>} : memref<8x1xf32, #tpu.memory_space<vmem>>, vector<8x1xf32>,
    return
  }
  func.func @transform_0(%arg0: i32) -> (i32, i32) {
    %c0_i32 = arith.constant 0 : i32
    %c0_i32_0 = arith.constant 0 : i32
    return %arg0, %c0_i32 : i32, i32
  }
  func.func @transform_1(%arg0: i32) -> (i32, i32) {
    %c0_i32 = arith.constant 0 : i32
    %c0_i32_0 = arith.constant 0 : i32
    return %arg0, %c0_i32 : i32, i32
  }
  func.func @transform_2(%arg0: i32) -> (i32, i32) {
    %c0_i32 = arith.constant 0 : i32
    %c0_i32_0 = arith.constant 0 : i32
    return %arg0, %c0_i32 : i32, i32
  }
  func.func @transform_3(%arg0: i32) -> (i32, i32) {
    %c0_i32 = arith.constant 0 : i32
    %c0_i32_0 = arith.constant 0 : i32
    return %arg0, %c0_i32 : i32, i32
  }
}

</mosaic_0001>

<llo_original>
// kernel: tpu_custom_call.1
$region0: #{tpu_custom_call.1}
  #allocation0 [shape = 'u32[]', space=smem, size = 0x4, offset = 0x4, fixed_abs, tag = 'smem constant byte address 0x4 - core index']
  #allocation1 [shape = 'u32[144,128]{1,0:T(1,128)}', space=vmem, size = 0x12000, scoped, tag = 'internal scratch']
  %s0 = inlined_call_operand.hbm [shape: f32[32,128], index: 0, kind: input, shape index: {}]
  %s1 = inlined_call_operand.hbm [shape: f32[32,128], index: 1, kind: input, shape index: {}]
  %s2 = inlined_call_operand.hbm [shape: f32[32,384], index: 2, kind: input, shape index: {}]
  %s3 = inlined_call_operand.vmem [shape: f32[32,1], index: 3, kind: output, shape index: {}]
  %s4 = sld [smem:[#allocation0]]
  $region57: #{tpu_custom_call.1} parent=0
    _
  %s6 = ssub.s32 1, %s4
  %s7 = scalar_select 0, %s6, %s4
  $region1: #{tpu_custom_call.1} parent=0
    #allocation2 [shape = 'u8[8192]{0}', space=vmem, size = 0x2000, scoped, tag = 'input window, operand 0']
    #allocation3 [shape = 's32[2]{0}', space=sflag, size = 0x8, scoped, tag = 'scoped memory for tpu_custom_call.1']
    #allocation4 [shape = 'u8[8192]{0}', space=vmem, size = 0x2000, scoped, tag = 'input window, operand 1']
    #allocation5 [shape = 's32[2]{0}', space=sflag, size = 0x8, scoped, tag = 'scoped memory for tpu_custom_call.1']
    #allocation6 [shape = 'u8[24576]{0}', space=vmem, size = 0x6000, scoped, tag = 'input window, operand 2']
    %8 = vsyncpa [#allocation3], 0
    %s9 = scalar_lea.sflag [#allocation3], 1
    %10 = vsyncpa %s9, 0
    %11 = vsyncpa [#allocation5], 0
    %s12 = scalar_lea.sflag [#allocation5], 1
    %13 = vsyncpa %s12, 0
    loop: start=0, step=1, limit=6
    $region2: #{tpu_custom_call.1} parent=1 // loop_pre_header
      _
    $region3: #{tpu_custom_call.1} parent=1 // loop_header
      %s15 = sphi 0, %s19
      %p16 = scmp.ge.s32.totalorder %s15, 6
      %s25 = sphi 0, %s27
      %s28 = sphi 0, %s25
      %s29 = sphi 0, %s28
      %s45 = sphi 0, %s29
      %s51 = sphi 0, %s53
      %s54 = sphi 0, %s51
      %s55 = sphi 0, %s54
      %s71 = sphi 0, %s55
      %s77 = sphi 0, %s79
      %s80 = sphi 0, %s77
      %s81 = sphi 0, %s80
      %s97 = sphi 0, %s81
      %s103 = sphi 0, %s105
      %s106 = sphi 0, %s103
      %s107 = sphi 0, %s106
      %s123 = sphi 0, %s107
    $region4: #{tpu_custom_call.1} parent=1 // loop_header_branch
      %18 = sbr.rel (%p16) target = $region8
    $region5: #{tpu_custom_call.1} parent=1 // loop_body
      %s20 = ssub.s32 %s15, 1
      %s21 = ssub.s32 %s15, 2
      %s22 = sadd.s32 %s15, 1
      %s23 = ssub.s32 %s15, %s22
      %p24 = scmp.eq.s32.totalorder %s23, 0
      %s26 = sadd.s32 %s25, 1
      %s27 = scalar_select %p24, %s25, %s26
      %p30 = pneg %p24
      %p31 = scmp.eq.s32.totalorder %s15, 3
      %p32 = por %p30, %p31
      %p33 = scmp.ne.s32.totalorder %s25, %s28
      %p34 = scmp.eq.s32.totalorder %s15, 0
      %p35 = por %p33, %p34
      %p36 = scmp.ne.s32.totalorder %s25, %s28
      %p37 = scmp.eq.s32.totalorder %s20, 3
      %p38 = por %p36, %p37
      %p39 = scmp.ne.s32.totalorder %s28, %s29
      %p40 = scmp.eq.s32.totalorder %s20, 0
      %p41 = por %p39, %p40
      %p42 = scmp.ne.s32.totalorder %s28, %s29
      %p43 = scmp.eq.s32.totalorder %s21, 3
      %p44 = por %p42, %p43
      %p46 = scmp.ne.s32.totalorder %s29, %s45
      %p47 = scmp.eq.s32.totalorder %s21, 0
      %p48 = por %p46, %p47
      %s49 = ssub.s32 %s15, %s22
      %p50 = scmp.eq.s32.totalorder %s49, 0
      %s52 = sadd.s32 %s51, 1
      %s53 = scalar_select %p50, %s51, %s52
      %p56 = pneg %p50
      %p57 = scmp.eq.s32.totalorder %s15, 3
      %p58 = por %p56, %p57
      %p59 = scmp.ne.s32.totalorder %s51, %s54
      %p60 = scmp.eq.s32.totalorder %s15, 0
      %p61 = por %p59, %p60
      %p62 = scmp.ne.s32.totalorder %s51, %s54
      %p63 = scmp.eq.s32.totalorder %s20, 3
      %p64 = por %p62, %p63
      %p65 = scmp.ne.s32.totalorder %s54, %s55
      %p66 = scmp.eq.s32.totalorder %s20, 0
      %p67 = por %p65, %p66
      %p68 = scmp.ne.s32.totalorder %s54, %s55
      %p69 = scmp.eq.s32.totalorder %s21, 3
      %p70 = por %p68, %p69
      %p72 = scmp.ne.s32.totalorder %s55, %s71
      %p73 = scmp.eq.s32.totalorder %s21, 0
      %p74 = por %p72, %p73
      %s75 = ssub.s32 %s15, %s22
      %p76 = scmp.eq.s32.totalorder %s75, 0
      %s78 = sadd.s32 %s77, 1
      %s79 = scalar_select %p76, %s77, %s78
      %p82 = pneg %p76
      %p83 = scmp.eq.s32.totalorder %s15, 3
      %p84 = por %p82, %p83
      %p85 = scmp.ne.s32.totalorder %s77, %s80
      %p86 = scmp.eq.s32.totalorder %s15, 0
      %p87 = por %p85, %p86
      %p88 = scmp.ne.s32.totalorder %s77, %s80
      %p89 = scmp.eq.s32.totalorder %s20, 3
      %p90 = por %p88, %p89
      %p91 = scmp.ne.s32.totalorder %s80, %s81
      %p92 = scmp.eq.s32.totalorder %s20, 0
      %p93 = por %p91, %p92
      %p94 = scmp.ne.s32.totalorder %s80, %s81
      %p95 = scmp.eq.s32.totalorder %s21, 3
      %p96 = por %p94, %p95
      %p98 = scmp.ne.s32.totalorder %s81, %s97
      %p99 = scmp.eq.s32.totalorder %s21, 0
      %p100 = por %p98, %p99
      %s101 = ssub.s32 %s15, %s22
      %p102 = scmp.eq.s32.totalorder %s101, 0
      %s104 = sadd.s32 %s103, 1
      %s105 = scalar_select %p102, %s103, %s104
      %p108 = pneg %p102
      %p109 = scmp.eq.s32.totalorder %s15, 3
      %p110 = por %p108, %p109
      %p111 = scmp.ne.s32.totalorder %s103, %s106
      %p112 = scmp.eq.s32.totalorder %s15, 0
      %p113 = por %p111, %p112
      %p114 = scmp.ne.s32.totalorder %s103, %s106
      %p115 = scmp.eq.s32.totalorder %s20, 3
      %p116 = por %p114, %p115
      %p117 = scmp.ne.s32.totalorder %s106, %s107
      %p118 = scmp.eq.s32.totalorder %s20, 0
      %p119 = por %p117, %p118
      %p120 = scmp.ne.s32.totalorder %s106, %s107
      %p121 = scmp.eq.s32.totalorder %s21, 3
      %p122 = por %p120, %p121
      %p124 = scmp.ne.s32.totalorder %s107, %s123
      %p125 = scmp.eq.s32.totalorder %s21, 0
      %p126 = por %p124, %p125
      %p127 = scmp.le.s32.totalorder 1, %s15
      %p128 = scmp.lt.s32.totalorder %s15, 5
      %p129 = pnand %p127, %p128
      %p130 = pneg %p129
      // Predicated region
      $region9: #{tpu_custom_call.1} parent=5 // pred_check
        _
      $region10: #{tpu_custom_call.1} parent=5 // pred_check_branch
        %132 = sbr.rel (%p129) target = $region12
      $region11: #{tpu_custom_call.1} parent=5 // pred_region
        %s133 = ssub.s32 %s15, 1
      $region12: #{tpu_custom_call.1} parent=5 // pred_fallthru
        _
      %p134 = scmp.lt.s32.totalorder %s15, 4
      // Predicated region
      $region13: #{tpu_custom_call.1} parent=5 // pred_check
        %p135 = pneg %p134
      $region14: #{tpu_custom_call.1} parent=5 // pred_check_branch
        %137 = sbr.rel (%p135) target = $region16
      $region15: #{tpu_custom_call.1} parent=5 // pred_region
        // Predicated region
        $region17: #{tpu_custom_call.1} parent=15 // pred_check
          %p138 = pneg %p35
        $region18: #{tpu_custom_call.1} parent=15 // pred_check_branch
          %140 = sbr.rel (%p138) target = $region20
        $region19: #{tpu_custom_call.1} parent=15 // pred_region
          %s141 = sand.u32 %s25, 1
          %s142 = scalar_lea.sflag [#allocation3], %s141
          %s143 = sand.u32 %s25, 1
          %s144 = smul.addr %s143, 8
          %s145 = scalar_lea.vmem [#allocation2], %s144
          %s147 = ssub.s32 128, 128
          %148 = vsyncadd %s142, %s147
          %s149 = smul.addr %s15, 128
          %s150 = scalar_lea.hbm %s0, %s149
          %s152 = sshll.u32 %s145, 4
          %s153 = int_to_ptr.vmem [resolvable:$true] %s152
          %155 = dma.hbm_to_vmem [thread:$0]  %s150, 128, %s153, %s142
        $region20: #{tpu_custom_call.1} parent=15 // pred_fallthru
          _
        // Predicated region
        $region21: #{tpu_custom_call.1} parent=15 // pred_check
          %p156 = pneg %p61
        $region22: #{tpu_custom_call.1} parent=15 // pred_check_branch
          %158 = sbr.rel (%p156) target = $region24
        $region23: #{tpu_custom_call.1} parent=15 // pred_region
          %s159 = sand.u32 %s15, 1
          %s160 = scalar_lea.sflag [#allocation5], %s159
          %s161 = sand.u32 %s51, 1
          %s162 = smul.addr %s161, 8
          %s163 = scalar_lea.vmem [#allocation4], %s162
          %s165 = ssub.s32 128, 128
          %166 = vsyncadd %s160, %s165
          %s167 = smul.addr %s15, 128
          %s168 = scalar_lea.hbm %s1, %s167
          %s170 = sshll.u32 %s163, 4
          %s171 = int_to_ptr.vmem [resolvable:$true] %s170
          %173 = dma.hbm_to_vmem [thread:$0]  %s168, 128, %s171, %s160
        $region24: #{tpu_custom_call.1} parent=15 // pred_fallthru
          _
        // Predicated region
        $region25: #{tpu_custom_call.1} parent=15 // pred_check
          %p174 = pneg %p87
        $region26: #{tpu_custom_call.1} parent=15 // pred_check_branch
          %176 = sbr.rel (%p174) target = $region28
        $region27: #{tpu_custom_call.1} parent=15 // pred_region
          %s177 = sand.u32 %s15, 1
          %s178 = scalar_lea.sflag [#allocation5], %s177
          %s179 = sand.u32 %s77, 1
          %s180 = smul.addr %s179, 24
          %s181 = scalar_lea.vmem [#allocation6], %s180
          %s183 = ssub.s32 384, 384
          %184 = vsyncadd %s178, %s183
          %s185 = smul.addr %s15, 3
          %s186 = smul.addr %s185, 128
          %s187 = scalar_lea.hbm %s2, %s186
          %s189 = sshll.u32 %s181, 4
          %s190 = int_to_ptr.vmem [resolvable:$true] %s189
          %192 = dma.hbm_to_vmem [thread:$0]  %s187, 384, %s190, %s178
        $region28: #{tpu_custom_call.1} parent=15 // pred_fallthru
          _
      $region16: #{tpu_custom_call.1} parent=5 // pred_fallthru
        _
      %p193 = scmp.le.s32.totalorder 1, %s15
      %p194 = scmp.lt.s32.totalorder %s15, 5
      %p195 = pnand %p193, %p194
      %p196 = pneg %p195
      // Predicated region
      $region29: #{tpu_custom_call.1} parent=5 // pred_check
        _
      $region30: #{tpu_custom_call.1} parent=5 // pred_check_branch
        %198 = sbr.rel (%p195) target = $region32
      $region31: #{tpu_custom_call.1} parent=5 // pred_region
        %s199 = ssub.s32 %s15, 1
        %s200 = sand.u32 %s28, 1
        %s201 = scalar_lea.sflag [#allocation3], %s200
        %s202 = sand.u32 %s28, 1
        %s203 = smul.addr %s202, 8
        %s204 = scalar_lea.vmem [#allocation2], %s203
        // Predicated region
        $region33: #{tpu_custom_call.1} parent=31 // pred_check
          %p205 = pneg %p41
        $region34: #{tpu_custom_call.1} parent=31 // pred_check_branch
          %207 = sbr.rel (%p205) target = $region36
        $region35: #{tpu_custom_call.1} parent=31 // pred_region
          %208 = dma.done %s201, 128
        $region36: #{tpu_custom_call.1} parent=31 // pred_fallthru
          _
        %s209 = sand.u32 %s20, 1
        %s210 = scalar_lea.sflag [#allocation5], %s209
        %s211 = sand.u32 %s54, 1
        %s212 = smul.addr %s211, 8
        %s213 = scalar_lea.vmem [#allocation4], %s212
        // Predicated region
        $region37: #{tpu_custom_call.1} parent=31 // pred_check
          %p214 = pneg %p67
        $region38: #{tpu_custom_call.1} parent=31 // pred_check_branch
          %216 = sbr.rel (%p214) target = $region40
        $region39: #{tpu_custom_call.1} parent=31 // pred_region
          %217 = dma.done %s210, 128
        $region40: #{tpu_custom_call.1} parent=31 // pred_fallthru
          _
        %s218 = sand.u32 %s20, 1
        %s219 = scalar_lea.sflag [#allocation5], %s218
        %s220 = sand.u32 %s80, 1
        %s221 = smul.addr %s220, 24
        %s222 = scalar_lea.vmem [#allocation6], %s221
        // Predicated region
        $region41: #{tpu_custom_call.1} parent=31 // pred_check
          %p223 = pneg %p93
        $region42: #{tpu_custom_call.1} parent=31 // pred_check_branch
          %225 = sbr.rel (%p223) target = $region44
        $region43: #{tpu_custom_call.1} parent=31 // pred_region
          %226 = dma.done %s219, 384
        $region44: #{tpu_custom_call.1} parent=31 // pred_fallthru
          _
        %s227 = sand.u32 %s28, 1
        %s228 = scalar_lea.sflag [#allocation3], %s227
        %s229 = sand.u32 %s28, 1
        %s230 = smul.addr %s229, 8
        %s231 = scalar_lea.vmem [#allocation2], %s230
        %p232 = pneg %p41
        %p233 = pneg %p38
        %s234 = sand.u32 %s20, 1
        %s235 = scalar_lea.sflag [#allocation5], %s234
        %s236 = sand.u32 %s54, 1
        %s237 = smul.addr %s236, 8
        %s238 = scalar_lea.vmem [#allocation4], %s237
        %p239 = pneg %p67
        %p240 = pneg %p64
        %s241 = sand.u32 %s20, 1
        %s242 = scalar_lea.sflag [#allocation5], %s241
        %s243 = sand.u32 %s80, 1
        %s244 = smul.addr %s243, 24
        %s245 = scalar_lea.vmem [#allocation6], %s244
        %p246 = pneg %p93
        %p247 = pneg %p90
        %p248 = pneg %p119
        %p249 = pneg %p116
        %p250 = scmp.lt.s32.totalorder %s20, 3
        %s251 = scalar_select %p250, %s20, 3
        %s252 = smul.addr %s251, 8
        %s253 = scalar_lea.vmem %s3, %s252
        %p254 = scmp.lt.s32.totalorder %s20, 3
        %s255 = scalar_select %p254, %s20, 3
        %s256 = smul.addr %s255, 8
        %s257 = scalar_lea.vmem %s3, %s256
        %v258 = vld [vmem:[%s204] sm:$0xff]
        %v259 = vld [vmem:[%s213] sm:$0xff]
        %v260 = vmul.f32 %v258, %v258
        %261 = vadd.xlane.f32.xlu0 %v260
        %v262 = vpop.xlane.xlu0 %261
        %v263 = vmul.f32 %v259, %v259
        %264 = vadd.xlane.f32.xlu0 %v263
        %v265 = vpop.xlane.xlu0 %264
        %v266 = vmul.f32 %v258, %v259
        %267 = vadd.xlane.f32.xlu0 %v266
        %v268 = vpop.xlane.xlu0 %267
        %v269 = vmul.f32 %v262, %v265
        %v270 = vmax.f32 %v269, 1e-14
        %v271 = vrsqrt.pop %v270
        %v272 = vmul.f32 %v268, %v271
        %v273 = vld [vmem:[%s222] sm:$0xff]
        %v274 = vmul.f32 %v273, %v273
        %275 = vadd.xlane.f32.xlu0 %v274
        %v276 = vpop.xlane.xlu0 %275
        %v277 = vmul.f32 %v258, %v273
        %278 = vadd.xlane.f32.xlu0 %v277
        %v279 = vpop.xlane.xlu0 %278
        %v280 = vmul.f32 %v262, %v276
        %v281 = vmax.f32 %v280, 1e-14
        %v282 = vrsqrt.pop %v281
        %v283 = vmul.f32 %v279, %v282
        %v284 = vmax.f32 %v272, %v283
        %v285 = vld [vmem:[%s222 + $0x8] sm:$0xff]
        %v286 = vmul.f32 %v285, %v285
        %287 = vadd.xlane.f32.xlu0 %v286
        %v288 = vpop.xlane.xlu0 %287
        %v289 = vmul.f32 %v258, %v285
        %290 = vadd.xlane.f32.xlu0 %v289
        %v291 = vpop.xlane.xlu0 %290
        %v292 = vmul.f32 %v262, %v288
        %v293 = vmax.f32 %v292, 1e-14
        %v294 = vrsqrt.pop %v293
        %v295 = vmul.f32 %v291, %v294
        %v296 = vmax.f32 %v284, %v295
        %v297 = vld [vmem:[%s222 + $0x10] sm:$0xff]
        %v298 = vmul.f32 %v297, %v297
        %299 = vadd.xlane.f32.xlu0 %v298
        %v300 = vpop.xlane.xlu0 %299
        %v301 = vmul.f32 %v258, %v297
        %302 = vadd.xlane.f32.xlu0 %v301
        %v303 = vpop.xlane.xlu0 %302
        %v304 = vmul.f32 %v262, %v300
        %v305 = vmax.f32 %v304, 1e-14
        %v306 = vrsqrt.pop %v305
        %v307 = vmul.f32 %v303, %v306
        %v308 = vmax.f32 %v296, %v307
        %v309 = vsub.f32 %v272, %v308
        %v310 = vmul.f32 %v309, 1.442695
        %v311 = vpow.pop %v310
        %v312 = vsub.f32 %v283, %v308
        %v313 = vmul.f32 %v312, 1.442695
        %v314 = vpow.pop %v313
        %v315 = vadd.f32 %v311, %v314
        %v316 = vsub.f32 %v295, %v308
        %v317 = vmul.f32 %v316, 1.442695
        %v318 = vpow.pop %v317
        %v319 = vadd.f32 %v315, %v318
        %v320 = vsub.f32 %v307, %v308
        %v321 = vmul.f32 %v320, 1.442695
        %v322 = vpow.pop %v321
        %v323 = vadd.f32 %v319, %v322
        %v324 = vlog2.pop %v323
        %v325 = vmul.f32 %v324, 0.6931472
        %v326 = vadd.f32 %v308, %v325
        %v327 = vsub.f32 %v326, %v272
        %vm328 = vcmask 7168
        %329 = vst.msk [vmem:[%s257] sm:$0xff] %vm328, %v327
        %p330 = scmp.lt.s32.totalorder %s20, 3
        %s331 = scalar_select %p330, %s20, 3
        %s332 = smul.addr %s331, 8
        %s333 = scalar_lea.vmem %s3, %s332
        // Predicated region
        $region45: #{tpu_custom_call.1} parent=31 // pred_check
          %p334 = pneg %p116
        $region46: #{tpu_custom_call.1} parent=31 // pred_check_branch
          %336 = sbr.rel (%p334) target = $region48
        $region47: #{tpu_custom_call.1} parent=31 // pred_region
          _
        $region48: #{tpu_custom_call.1} parent=31 // pred_fallthru
          _
      $region32: #{tpu_custom_call.1} parent=5 // pred_fallthru
        _
      %p337 = scmp.le.s32.totalorder 2, %s15
      // Predicated region
      $region49: #{tpu_custom_call.1} parent=5 // pred_check
        %p338 = pneg %p337
      $region50: #{tpu_custom_call.1} parent=5 // pred_check_branch
        %340 = sbr.rel (%p338) target = $region52
      $region51: #{tpu_custom_call.1} parent=5 // pred_region
        %s341 = ssub.s32 %s15, 2
        // Predicated region
        $region53: #{tpu_custom_call.1} parent=51 // pred_check
          %p342 = pneg %p122
        $region54: #{tpu_custom_call.1} parent=51 // pred_check_branch
          %344 = sbr.rel (%p342) target = $region56
        $region55: #{tpu_custom_call.1} parent=51 // pred_region
          %p345 = scmp.lt.s32.totalorder %s21, 3
          %s346 = scalar_select %p345, %s21, 3
          %s347 = smul.addr %s346, 8
          %s348 = scalar_lea.vmem %s3, %s347
        $region56: #{tpu_custom_call.1} parent=51 // pred_fallthru
          _
      $region52: #{tpu_custom_call.1} parent=5 // pred_fallthru
        _
    $region6: #{tpu_custom_call.1} parent=1 // loop_footer
      %s19 = sadd.s32 1, %s15
    $region7: #{tpu_custom_call.1} parent=1 // loop_footer_branch
      %14 = sbr.rel target = $region3
    $region8: #{tpu_custom_call.1} parent=1 // loop_exit
      _
    %349 = vsyncpa [#allocation3], 1
    %s350 = scalar_lea.sflag [#allocation3], 1
    %351 = vsyncpa %s350, 1
    %352 = vsyncpa [#allocation5], 1
    %s353 = scalar_lea.sflag [#allocation5], 1
    %354 = vsyncpa %s353, 1

</llo_original>
